<compile_context>
chip_gen: v7x
topology: tpu7x:2x2x1
jax: 0.10.0
libtpu: 0.0.40
codegen_flags: <defaults>
</compile_context>

<pallas_src>
import functools

import jax
import jax.numpy as jnp
from jax.experimental import pallas as pl
from jax.experimental.pallas import tpu as pltpu


def _router_kernel(x_ref, w_ref, triu_ref,          # in:  [TN,D], [D,E], [TN,TN]
                   logits_ref,                       # out: [TN,E] f32 gate logits
                   ent_ref,                          # out: [1,TN] f32 gate entropy
                   idx_ref,                          # out: [1,TN] i32 top-1 expert
                   mask_ref,                         # out: [1,TN] i32 capacity keep
                   counts_ref,                       # out-acc: [E,1] tokens/expert
                   psum_ref,                         # out-acc: [E,1] sum softmax p
                   *, capacity: float, n_valid: int):
    i = pl.program_id(0)
    tn = x_ref.shape[0]
    n_exp = w_ref.shape[1]

    @pl.when(i == 0)
    def _():
        counts_ref[...] = jnp.zeros_like(counts_ref)
        psum_ref[...] = jnp.zeros_like(psum_ref)

    # ---- gate matmul (MXU, bf16 in / f32 out) ----
    logits = jnp.dot(x_ref[...], w_ref[...], preferred_element_type=jnp.float32)
    logits_ref[...] = logits                                   # [TN, E]

    # One cheap XLU transpose; everything below is lane-dense over tokens.
    lt = logits.T                                              # [E, TN]

    # padding mask for the (zero) tail tokens
    tok = i * tn + jax.lax.broadcasted_iota(jnp.int32, (1, tn), 1)
    valid = (tok < n_valid).astype(jnp.float32)                # [1, TN]

    # ---- softmax + entropy over experts (axis 0 = sublanes, only E rows) ----
    m = jnp.max(lt, axis=0, keepdims=True)                     # [1, TN]
    ex = jnp.exp(lt - m)
    denom = jnp.sum(ex, axis=0, keepdims=True)                 # [1, TN]
    inv = pl.reciprocal(denom, approx=True)                    # EUP slot
    probs = ex * inv                                           # [E, TN]
    logprobs = (lt - m) - jnp.log(denom)
    ent_ref[...] = -jnp.sum(probs * logprobs, axis=0, keepdims=True)

    # ---- top-1 (value not needed: softmax over k=1 weights == 1) ----
    eidx = jax.lax.broadcasted_iota(jnp.int32, (n_exp, tn), 0)
    idx = jnp.min(jnp.where(lt == m, eidx, n_exp), axis=0, keepdims=True)
    idx_ref[...] = idx.astype(jnp.int32)                       # [1, TN]

    one_hot = jnp.where(eidx == idx, 1.0, 0.0) * valid         # [E, TN] f32

    # ---- Switch capacity mask: arrival rank within own expert < capacity ----
    prev = counts_ref[...]                                     # [E, 1]
    prev_at_own = jnp.sum(one_hot * prev, axis=0, keepdims=True)          # [1,TN]
    # exclusive prefix count per expert via MXU: one_hot @ strict_upper_tri
    excl = jnp.dot(one_hot.astype(triu_ref.dtype), triu_ref[...],
                   preferred_element_type=jnp.float32)                    # [E,TN]
    within = jnp.sum(one_hot * excl, axis=0, keepdims=True)               # [1,TN]
    rank = prev_at_own + within
    mask_ref[...] = (rank < capacity).astype(jnp.int32)

    # ---- accumulate per-expert statistics ----
    counts_ref[...] = prev + jnp.sum(one_hot, axis=1, keepdims=True)
    psum_ref[...] = psum_ref[...] + jnp.sum(probs * valid, axis=1, keepdims=True)


def switch_router_pallas(x, gate_w_t, *, capacity_factor=1.25,
                         balance_loss_weight=0.01, token_tile=256,
                         gate_in_bf16=True, vmem_limit_bytes=None):
    """Switch (top-1) router forward.

    x: [B, S, D]; gate_w_t: [D, E] (transposed nn.Linear weight, bias-free).
    token_tile: rows per grid step; multiple of 128. 256 fits default scoped
      VMEM on all generations (v7x has only 64 MiB physical); on v5e/v6e you
      can use 512-1024 together with a raised vmem_limit_bytes.
    """
    assert token_tile % 128 == 0, "token_tile must be a multiple of 128"
    b, s, d = x.shape
    e = gate_w_t.shape[1]
    n = b * s
    top_k = 1

    tn = token_tile
    n_tiles = pl.cdiv(n, tn)
    n_pad = n_tiles * tn

    capacity = max(int(n * top_k / e * capacity_factor), 4)

    x_flat = x.reshape(n, d)
    if n_pad != n:
        x_flat = jnp.pad(x_flat, ((0, n_pad - n), (0, 0)))
    w = gate_w_t
    if gate_in_bf16:
        x_flat = x_flat.astype(jnp.bfloat16)
        w = w.astype(jnp.bfloat16)

    # strictly-upper-triangular ones (bf16 is exact for 0/1; f32 MXU accumulate)
    r = jnp.arange(tn, dtype=jnp.int32)
    triu = (r[:, None] < r[None, :]).astype(jnp.bfloat16)      # [TN, TN]

    kernel = functools.partial(_router_kernel,
                               capacity=float(capacity), n_valid=n)

    out_shape = (
        jax.ShapeDtypeStruct((n_pad, e), jnp.float32),   # gate logits
        jax.ShapeDtypeStruct((n_tiles, tn), jnp.float32),  # per-token entropy
        jax.ShapeDtypeStruct((n_tiles, tn), jnp.int32),    # top-1 expert index
        jax.ShapeDtypeStruct((n_tiles, tn), jnp.int32),    # capacity keep-mask
        jax.ShapeDtypeStruct((e, 1), jnp.float32),         # tokens per expert
        jax.ShapeDtypeStruct((e, 1), jnp.float32),         # sum of softmax probs
    )
    grid_spec = pltpu.PrefetchScalarGridSpec(
        num_scalar_prefetch=0,
        grid=(n_tiles,),
        in_specs=[
            pl.BlockSpec((tn, d), lambda i: (i, 0)),
            pl.BlockSpec((d, e), lambda i: (0, 0)),      # resident (fetched once)
            pl.BlockSpec((tn, tn), lambda i: (0, 0)),    # resident (fetched once)
        ],
        out_specs=[
            pl.BlockSpec((tn, e), lambda i: (i, 0)),
            pl.BlockSpec((1, tn), lambda i: (i, 0)),     # lane-dense per-token
            pl.BlockSpec((1, tn), lambda i: (i, 0)),
            pl.BlockSpec((1, tn), lambda i: (i, 0)),
            pl.BlockSpec((e, 1), lambda i: (0, 0)),      # VMEM-resident accum
            pl.BlockSpec((e, 1), lambda i: (0, 0)),
        ],
    )
    (logits_pad, ent2d, idx2d, mask2d, counts2d, psum2d) = pl.pallas_call(
        kernel,
        out_shape=out_shape,
        grid_spec=grid_spec,
        compiler_params=pltpu.CompilerParams(
            dimension_semantics=("arbitrary",),           # running-count carry
            vmem_limit_bytes=vmem_limit_bytes),
    )(x_flat, w, triu)

    # ---- plain-JAX glue (matches TopKRouter / SwitchRouter bookkeeping) ----
    gate_logits = logits_pad[:n]
    ent = ent2d.reshape(n_pad)[:n]
    top1_idx = idx2d.reshape(n_pad)[:n]
    capacity_mask = mask2d.reshape(n_pad)[:n].astype(jnp.bool_)
    counts = counts2d[:, 0]                               # [E]
    psum = psum2d[:, 0]                                   # [E]

    fraction_per_expert = counts / (n * top_k)
    avg_gate_prob = psum / n
    balance_loss = jnp.sum(fraction_per_expert * avg_gate_prob) * e

    expert_weights = jnp.ones((n, top_k), jnp.float32)    # softmax over k=1
    tokens_dropped = jnp.sum(~capacity_mask).astype(jnp.float32)
    expert_utilization = counts / (jnp.sum(counts) + 1e-8)

    output = {
        "expert_indices": top1_idx[:, None],              # [N, 1] int32
        "expert_weights": expert_weights,                 # [N, 1]
        "gate_logits": gate_logits,                       # [N, E]
        "balance_loss": balance_loss * balance_loss_weight,
        "capacity": capacity,
        "capacity_mask": capacity_mask,                   # [N] bool
        "metrics": {
            "gate_computation_time_ms": 0.0,
            "balance_loss_raw": balance_loss,
            "balance_loss_weighted": balance_loss * balance_loss_weight,
            "capacity": capacity,
            "avg_top_k_confidence": jnp.mean(expert_weights),
            "gate_entropy": jnp.mean(ent),
            "expert_usage_current": counts,
            "expert_utilization_current": expert_utilization,
            "total_assignments": jnp.sum(counts),
            "usage_variance": jnp.var(expert_utilization, ddof=1),
            "max_expert_usage": jnp.max(expert_utilization),
            "min_expert_usage": jnp.min(expert_utilization),
            "tokens_dropped": tokens_dropped,
            "drop_rate": tokens_dropped / n,
        },
    }
    return output


if __name__ == "__main__":
    # Small shapes consistent with the module: x [batch, seq, d_model]
    batch, seq, d_model, n_experts = 2, 8, 32, 8

    key = jax.random.PRNGKey(0)
    kx, kw = jax.random.split(key)
    x = jax.random.normal(kx, (batch, seq, d_model), dtype=jnp.float32)
    # nn.Linear(d_model, n_experts, bias=False), weight ~ N(0, 0.02), stored [E, D]
    gate_w = 0.02 * jax.random.normal(kw, (n_experts, d_model), dtype=jnp.float32)
    gate_w_t = gate_w.T  # [D, E] for x_flat @ W

    out = switch_router_pallas(x, gate_w_t)
    jax.block_until_ready(out["gate_logits"])
    jax.block_until_ready(out["expert_indices"])
    jax.block_until_ready(out["capacity_mask"])
    jax.block_until_ready(out["balance_loss"])
    jax.block_until_ready(out["metrics"]["gate_entropy"])

    print("KERNEL_OK")
</pallas_src>

<mosaic_0001>
module attributes {stable_mosaic.version = 11 : i64} {
  func.func @_router_kernel(%arg0: i32, %arg1: memref<256x32xbf16, #tpu.memory_space<vmem>>, %arg2: memref<32x8xbf16, #tpu.memory_space<vmem>>, %arg3: memref<256x256xbf16, #tpu.memory_space<vmem>>, %arg4: memref<256x8xf32, #tpu.memory_space<vmem>>, %arg5: memref<1x256xf32, #tpu.memory_space<vmem>>, %arg6: memref<1x256xi32, #tpu.memory_space<vmem>>, %arg7: memref<1x256xi32, #tpu.memory_space<vmem>>, %arg8: memref<8x1xf32, #tpu.memory_space<vmem>>, %arg9: memref<8x1xf32, #tpu.memory_space<vmem>>) attributes {dimension_semantics = [#tpu.dimension_semantics<arbitrary>], iteration_bounds = array<i64: 1>, scalar_prefetch = 0 : i64, scratch_operands = 0 : i64, tpu.core_type = #tpu.core_type<tc>, window_params = [{transform_indices = @transform_0, window_bounds = array<i64: 256, 32>}, {pipeline_mode = #tpu.pipeline_mode<synchronous>, transform_indices = @transform_1, window_bounds = array<i64: 32, 8>}, {pipeline_mode = #tpu.pipeline_mode<synchronous>, transform_indices = @transform_2, window_bounds = array<i64: 256, 256>}, {transform_indices = @transform_3, window_bounds = array<i64: 256, 8>}, {transform_indices = @transform_4, window_bounds = array<i64: 1, 256>}, {transform_indices = @transform_5, window_bounds = array<i64: 1, 256>}, {transform_indices = @transform_6, window_bounds = array<i64: 1, 256>}, {pipeline_mode = #tpu.pipeline_mode<synchronous>, transform_indices = @transform_7, window_bounds = array<i64: 8, 1>}, {pipeline_mode = #tpu.pipeline_mode<synchronous>, transform_indices = @transform_8, window_bounds = array<i64: 8, 1>}]} {
    %c0_i32 = arith.constant 0 : i32
    %0 = arith.cmpi eq, %arg0, %c0_i32 : i32
    %1 = arith.extui %0 : i1 to i32
    %c0_i32_0 = arith.constant 0 : i32
    %2 = arith.cmpi ne, %1, %c0_i32_0 : i32
    scf.if %2 {
      %cst_35 = arith.constant 0.000000e+00 : f32
      %79 = vector.broadcast %cst_35 : f32 to vector<8x1xf32>
      %c0_36 = arith.constant 0 : index
      %c0_37 = arith.constant 0 : index
      %80 = vector.load %arg8[%c0_36, %c0_37] : memref<8x1xf32, #tpu.memory_space<vmem>>, vector<8x1xf32>
      tpu.vector_store %arg8[%c0_36, %c0_37], %79 {strides = array<i32>} : memref<8x1xf32, #tpu.memory_space<vmem>>, vector<8x1xf32>,
      %cst_38 = arith.constant 0.000000e+00 : f32
      %81 = vector.broadcast %cst_38 : f32 to vector<8x1xf32>
      %c0_39 = arith.constant 0 : index
      %c0_40 = arith.constant 0 : index
      %82 = vector.load %arg9[%c0_39, %c0_40] : memref<8x1xf32, #tpu.memory_space<vmem>>, vector<8x1xf32>
      tpu.vector_store %arg9[%c0_39, %c0_40], %81 {strides = array<i32>} : memref<8x1xf32, #tpu.memory_space<vmem>>, vector<8x1xf32>,
    } else {
    }
    %c0 = arith.constant 0 : index
    %c0_1 = arith.constant 0 : index
    %3 = vector.load %arg1[%c0, %c0_1] : memref<256x32xbf16, #tpu.memory_space<vmem>>, vector<256x32xbf16>
    %c0_2 = arith.constant 0 : index
    %c0_3 = arith.constant 0 : index
    %4 = vector.load %arg2[%c0_2, %c0_3] : memref<32x8xbf16, #tpu.memory_space<vmem>>, vector<32x8xbf16>
    %cst = arith.constant dense<0.000000e+00> : vector<256x8xf32>
    %5 = tpu.matmul %3, %4, %cst {dimension_numbers = #tpu.dot_dimension_numbers<[1], [0], [0], [1], [0, 0, 1, 1], [], []>} : vector<256x32xbf16>, vector<32x8xbf16>, vector<256x8xf32> -> vector<256x8xf32>
    %c0_4 = arith.constant 0 : index
    %c0_5 = arith.constant 0 : index
    %6 = vector.load %arg4[%c0_4, %c0_5] : memref<256x8xf32, #tpu.memory_space<vmem>>, vector<256x8xf32>
    tpu.vector_store %arg4[%c0_4, %c0_5], %5 {strides = array<i32>} : memref<256x8xf32, #tpu.memory_space<vmem>>, vector<256x8xf32>,
    %7 = tpu.transpose %5, [1, 0] : vector<256x8xf32> -> vector<8x256xf32>
    %c256_i32 = arith.constant 256 : i32
    %8 = arith.muli %arg0, %c256_i32 : i32
    %9 = tpu.iota {dimensions = array<i32: 1>} : vector<1x256xi32>
    %10 = vector.broadcast %8 : i32 to vector<1x256xi32>
    %11 = arith.addi %10, %9 : vector<1x256xi32>
    %c16_i32 = arith.constant 16 : i32
    %12 = vector.broadcast %c16_i32 : i32 to vector<1x256xi32>
    %13 = arith.cmpi slt, %11, %12 : vector<1x256xi32>
    %14 = arith.extui %13 : vector<1x256xi1> to vector<1x256xi32>
    %15 = arith.sitofp %14 : vector<1x256xi32> to vector<1x256xf32>
    %cst_6 = arith.constant dense<0xFF800000> : vector<256xf32>
    %16 = vector.multi_reduction <maximumf>, %7, %cst_6 [0] : vector<8x256xf32> to vector<256xf32>
    %17 = vector.shape_cast %16 : vector<256xf32> to vector<1x256xf32>
    %18 = vector.broadcast %17 : vector<1x256xf32> to vector<8x256xf32>
    %19 = arith.subf %7, %18 : vector<8x256xf32>
    %20 = math.exp %19 : vector<8x256xf32>
    %cst_7 = arith.constant dense<0.000000e+00> : vector<256xf32>
    %21 = vector.multi_reduction <add>, %20, %cst_7 [0] : vector<8x256xf32> to vector<256xf32>
    %22 = vector.shape_cast %21 : vector<256xf32> to vector<1x256xf32>
    %23 = tpu.reciprocal %22 {approx = true} : vector<1x256xf32> -> vector<1x256xf32>
    %24 = vector.broadcast %23 : vector<1x256xf32> to vector<8x256xf32>
    %25 = arith.mulf %20, %24 : vector<8x256xf32>
    %26 = vector.broadcast %17 : vector<1x256xf32> to vector<8x256xf32>
    %27 = arith.subf %7, %26 : vector<8x256xf32>
    %28 = math.log %22 : vector<1x256xf32>
    %29 = vector.broadcast %28 : vector<1x256xf32> to vector<8x256xf32>
    %30 = arith.subf %27, %29 : vector<8x256xf32>
    %31 = arith.mulf %25, %30 : vector<8x256xf32>
    %cst_8 = arith.constant dense<0.000000e+00> : vector<256xf32>
    %32 = vector.multi_reduction <add>, %31, %cst_8 [0] : vector<8x256xf32> to vector<256xf32>
    %33 = vector.shape_cast %32 : vector<256xf32> to vector<1x256xf32>
    %cst_9 = arith.constant 0.000000e+00 : f32
    %34 = vector.broadcast %cst_9 : f32 to vector<1x256xf32>
    %35 = arith.subf %34, %33 : vector<1x256xf32>
    %c0_10 = arith.constant 0 : index
    %c0_11 = arith.constant 0 : index
    %36 = vector.load %arg5[%c0_10, %c0_11] : memref<1x256xf32, #tpu.memory_space<vmem>>, vector<1x256xf32>
    tpu.vector_store %arg5[%c0_10, %c0_11], %35 {strides = array<i32>} : memref<1x256xf32, #tpu.memory_space<vmem>>, vector<1x256xf32>,
    %37 = tpu.iota {dimensions = array<i32: 0>} : vector<8x256xi32>
    %38 = vector.broadcast %17 : vector<1x256xf32> to vector<8x256xf32>
    %39 = arith.cmpf oeq, %7, %38 : vector<8x256xf32>
    %c8_i32 = arith.constant 8 : i32
    %40 = vector.broadcast %c8_i32 : i32 to vector<8x256xi32>
    %41 = arith.select %39, %37, %40 : vector<8x256xi1>, vector<8x256xi32>
    %cst_12 = arith.constant dense<2147483647> : vector<256xi32>
    %42 = vector.multi_reduction <minsi>, %41, %cst_12 [0] : vector<8x256xi32> to vector<256xi32>
    %43 = vector.shape_cast %42 : vector<256xi32> to vector<1x256xi32>
    %c0_13 = arith.constant 0 : index
    %c0_14 = arith.constant 0 : index
    %44 = vector.load %arg6[%c0_13, %c0_14] : memref<1x256xi32, #tpu.memory_space<vmem>>, vector<1x256xi32>
    tpu.vector_store %arg6[%c0_13, %c0_14], %43 {strides = array<i32>} : memref<1x256xi32, #tpu.memory_space<vmem>>, vector<1x256xi32>,
    %45 = vector.broadcast %43 : vector<1x256xi32> to vector<8x256xi32>
    %46 = arith.cmpi eq, %37, %45 : vector<8x256xi32>
    %cst_15 = arith.constant 1.000000e+00 : f32
    %cst_16 = arith.constant 0.000000e+00 : f32
    %47 = vector.broadcast %cst_15 : f32 to vector<8x256xf32>
    %48 = vector.broadcast %cst_16 : f32 to vector<8x256xf32>
    %49 = arith.select %46, %47, %48 : vector<8x256xi1>, vector<8x256xf32>
    %50 = vector.broadcast %15 : vector<1x256xf32> to vector<8x256xf32>
    %51 = arith.mulf %49, %50 : vector<8x256xf32>
    %c0_17 = arith.constant 0 : index
    %c0_18 = arith.constant 0 : index
    %52 = vector.load %arg8[%c0_17, %c0_18] : memref<8x1xf32, #tpu.memory_space<vmem>>, vector<8x1xf32>
    %53 = vector.broadcast %52 : vector<8x1xf32> to vector<8x256xf32>
    %54 = arith.mulf %51, %53 : vector<8x256xf32>
    %cst_19 = arith.constant dense<0.000000e+00> : vector<256xf32>
    %55 = vector.multi_reduction <add>, %54, %cst_19 [0] : vector<8x256xf32> to vector<256xf32>
    %56 = vector.shape_cast %55 : vector<256xf32> to vector<1x256xf32>
    %57 = arith.truncf %51 : vector<8x256xf32> to vector<8x256xbf16>
    %c0_20 = arith.constant 0 : index
    %c0_21 = arith.constant 0 : index
    %58 = vector.load %arg3[%c0_20, %c0_21] : memref<256x256xbf16, #tpu.memory_space<vmem>>, vector<256x256xbf16>
    %cst_22 = arith.constant dense<0.000000e+00> : vector<8x256xf32>
    %59 = tpu.matmul %57, %58, %cst_22 {dimension_numbers = #tpu.dot_dimension_numbers<[1], [0], [0], [1], [0, 0, 1, 1], [], []>} : vector<8x256xbf16>, vector<256x256xbf16>, vector<8x256xf32> -> vector<8x256xf32>
    %60 = arith.mulf %51, %59 : vector<8x256xf32>
    %cst_23 = arith.constant dense<0.000000e+00> : vector<256xf32>
    %61 = vector.multi_reduction <add>, %60, %cst_23 [0] : vector<8x256xf32> to vector<256xf32>
    %62 = vector.shape_cast %61 : vector<256xf32> to vector<1x256xf32>
    %63 = arith.addf %56, %62 : vector<1x256xf32>
    %cst_24 = arith.constant 4.000000e+00 : f32
    %64 = vector.broadcast %cst_24 : f32 to vector<1x256xf32>
    %65 = arith.cmpf olt, %63, %64 : vector<1x256xf32>
    %66 = arith.extui %65 : vector<1x256xi1> to vector<1x256xi32>
    %c0_25 = arith.constant 0 : index
    %c0_26 = arith.constant 0 : index
    %67 = vector.load %arg7[%c0_25, %c0_26] : memref<1x256xi32, #tpu.memory_space<vmem>>, vector<1x256xi32>
    tpu.vector_store %arg7[%c0_25, %c0_26], %66 {strides = array<i32>} : memref<1x256xi32, #tpu.memory_space<vmem>>, vector<1x256xi32>,
    %cst_27 = arith.constant dense<0.000000e+00> : vector<8xf32>
    %68 = vector.multi_reduction <add>, %51, %cst_27 [1] : vector<8x256xf32> to vector<8xf32>
    %69 = vector.shape_cast %68 : vector<8xf32> to vector<8x1xf32>
    %70 = arith.addf %52, %69 : vector<8x1xf32>
    %c0_28 = arith.constant 0 : index
    %c0_29 = arith.constant 0 : index
    %71 = vector.load %arg8[%c0_28, %c0_29] : memref<8x1xf32, #tpu.memory_space<vmem>>, vector<8x1xf32>
    tpu.vector_store %arg8[%c0_28, %c0_29], %70 {strides = array<i32>} : memref<8x1xf32, #tpu.memory_space<vmem>>, vector<8x1xf32>,
    %c0_30 = arith.constant 0 : index
    %c0_31 = arith.constant 0 : index
    %72 = vector.load %arg9[%c0_30, %c0_31] : memref<8x1xf32, #tpu.memory_space<vmem>>, vector<8x1xf32>
    %73 = vector.broadcast %15 : vector<1x256xf32> to vector<8x256xf32>
    %74 = arith.mulf %25, %73 : vector<8x256xf32>
    %cst_32 = arith.constant dense<0.000000e+00> : vector<8xf32>
    %75 = vector.multi_reduction <add>, %74, %cst_32 [1] : vector<8x256xf32> to vector<8xf32>
    %76 = vector.shape_cast %75 : vector<8xf32> to vector<8x1xf32>
    %77 = arith.addf %72, %76 : vector<8x1xf32>
    %c0_33 = arith.constant 0 : index
    %c0_34 = arith.constant 0 : index
    %78 = vector.load %arg9[%c0_33, %c0_34] : memref<8x1xf32, #tpu.memory_space<vmem>>, vector<8x1xf32>
    tpu.vector_store %arg9[%c0_33, %c0_34], %77 {strides = array<i32>} : memref<8x1xf32, #tpu.memory_space<vmem>>, vector<8x1xf32>,
    return
  }
  func.func @transform_0(%arg0: i32) -> (i32, i32) {
    %c0_i32 = arith.constant 0 : i32
    %c0_i32_0 = arith.constant 0 : i32
    return %arg0, %c0_i32 : i32, i32
  }
  func.func @transform_1(%arg0: i32) -> (i32, i32) {
    %c0_i32 = arith.constant 0 : i32
    %c0_i32_0 = arith.constant 0 : i32
    %c0_i32_1 = arith.constant 0 : i32
    return %c0_i32, %c0_i32_0 : i32, i32
  }
  func.func @transform_2(%arg0: i32) -> (i32, i32) {
    %c0_i32 = arith.constant 0 : i32
    %c0_i32_0 = arith.constant 0 : i32
    %c0_i32_1 = arith.constant 0 : i32
    return %c0_i32, %c0_i32_0 : i32, i32
  }
  func.func @transform_3(%arg0: i32) -> (i32, i32) {
    %c0_i32 = arith.constant 0 : i32
    %c0_i32_0 = arith.constant 0 : i32
    return %arg0, %c0_i32 : i32, i32
  }
  func.func @transform_4(%arg0: i32) -> (i32, i32) {
    %c0_i32 = arith.constant 0 : i32
    %c0_i32_0 = arith.constant 0 : i32
    return %arg0, %c0_i32 : i32, i32
  }
  func.func @transform_5(%arg0: i32) -> (i32, i32) {
    %c0_i32 = arith.constant 0 : i32
    %c0_i32_0 = arith.constant 0 : i32
    return %arg0, %c0_i32 : i32, i32
  }
  func.func @transform_6(%arg0: i32) -> (i32, i32) {
    %c0_i32 = arith.constant 0 : i32
    %c0_i32_0 = arith.constant 0 : i32
    return %arg0, %c0_i32 : i32, i32
  }
  func.func @transform_7(%arg0: i32) -> (i32, i32) {
    %c0_i32 = arith.constant 0 : i32
    %c0_i32_0 = arith.constant 0 : i32
    %c0_i32_1 = arith.constant 0 : i32
    return %c0_i32, %c0_i32_0 : i32, i32
  }
  func.func @transform_8(%arg0: i32) -> (i32, i32) {
    %c0_i32 = arith.constant 0 : i32
    %c0_i32_0 = arith.constant 0 : i32
    %c0_i32_1 = arith.constant 0 : i32
    return %c0_i32, %c0_i32_0 : i32, i32
  }
}

</mosaic_0001>

<llo_original>
// kernel: tpu_custom_call.1
$region0: #{tpu_custom_call.1}
  #allocation0 [shape = 'u32[]', space=smem, size = 0x4, offset = 0x4, fixed_abs, tag = 'smem constant byte address 0x4 - core index']
  #allocation1 [shape = 'u32[144,128]{1,0:T(1,128)}', space=vmem, size = 0x12000, scoped, tag = 'internal scratch']
  %s0 = inlined_call_operand.vmem [shape: bf16[256,32], index: 0, kind: input, shape index: {}]
  %s1 = inlined_call_operand.vmem [shape: bf16[32,8], index: 1, kind: input, shape index: {}]
  %s2 = inlined_call_operand.hbm [shape: bf16[256,256], index: 2, kind: input, shape index: {}]
  %s3 = inlined_call_operand.vmem [shape: f32[256,8], index: 3, kind: output, shape index: {0}]
  %s4 = inlined_call_operand.hbm [shape: f32[1,256], index: 4, kind: output, shape index: {1}]
  %s5 = inlined_call_operand.hbm [shape: s32[1,256], index: 5, kind: output, shape index: {2}]
  %s6 = inlined_call_operand.hbm [shape: s32[1,256], index: 6, kind: output, shape index: {3}]
  %s7 = inlined_call_operand.vmem [shape: f32[8,1], index: 7, kind: output, shape index: {4}]
  %s8 = inlined_call_operand.vmem [shape: f32[8,1], index: 8, kind: output, shape index: {5}]
  %9 = xla_tuple %s3, %s4, %s5, %s6, %s7, %s8
  %s10 = sld [smem:[#allocation0]]
  $region70: #{tpu_custom_call.1} parent=0
    _
  %s12 = ssub.s32 1, %s10
  %s13 = scalar_select 0, %s12, %s10
  $region1: #{tpu_custom_call.1} parent=0
    #allocation2 [shape = 'u8[131072]{0}', space=vmem, size = 0x20000, scoped, tag = 'input window, operand 2, single buffered']
    #allocation3 [shape = 's32[1]{0}', space=sflag, size = 0x4, scoped, tag = 'scoped memory for tpu_custom_call.1']
    #allocation4 [shape = 's32[1]{0}', space=sflag, size = 0x4, scoped, tag = 'scoped memory for tpu_custom_call.1']
    #allocation5 [shape = 'u8[1024]{0}', space=vmem, size = 0x400, scoped, tag = 'output window, operand 1, single buffered']
    #allocation6 [shape = 'u8[1024]{0}', space=vmem, size = 0x400, scoped, tag = 'output window, operand 2, single buffered']
    #allocation7 [shape = 's32[1]{0}', space=sflag, size = 0x4, scoped, tag = 'scoped memory for tpu_custom_call.1']
    #allocation8 [shape = 'u8[1024]{0}', space=vmem, size = 0x400, scoped, tag = 'output window, operand 3, single buffered']
    %14 = vsyncpa [#allocation3], 0
    %15 = vsyncpa [#allocation4], 0
    %16 = vsyncpa [#allocation7], 0
    // Predicated region
    $region2: #{tpu_custom_call.1} parent=1 // pred_check
      _
    $region3: #{tpu_custom_call.1} parent=1 // pred_check_branch
      %18 = sbr.rel (0) target = $region5
    $region4: #{tpu_custom_call.1} parent=1 // pred_region
      _
    $region5: #{tpu_custom_call.1} parent=1 // pred_fallthru
      _
    // Predicated region
    $region6: #{tpu_custom_call.1} parent=1 // pred_check
      _
    $region7: #{tpu_custom_call.1} parent=1 // pred_check_branch
      %20 = sbr.rel (0) target = $region9
    $region8: #{tpu_custom_call.1} parent=1 // pred_region
      _
    $region9: #{tpu_custom_call.1} parent=1 // pred_fallthru
      _
    // Predicated region
    $region10: #{tpu_custom_call.1} parent=1 // pred_check
      _
    $region11: #{tpu_custom_call.1} parent=1 // pred_check_branch
      %22 = sbr.rel (0) target = $region13
    $region12: #{tpu_custom_call.1} parent=1 // pred_region
      %s24 = ssub.s32 4096, 4096
      %25 = vsyncadd [#allocation3], %s24
      %s26 = sshll.u32 [#allocation2], 4
      %s27 = int_to_ptr.vmem [resolvable:$true] %s26
      %32 = dma.hbm_to_vmem [thread:$0]  %s2, 4096, %s27, [#allocation3], 128, 128, 8
    $region13: #{tpu_custom_call.1} parent=1 // pred_fallthru
      _
    // Predicated region
    $region14: #{tpu_custom_call.1} parent=1 // pred_check
      _
    $region15: #{tpu_custom_call.1} parent=1 // pred_check_branch
      %34 = sbr.rel (0) target = $region17
    $region16: #{tpu_custom_call.1} parent=1 // pred_region
      %35 = dma.done [#allocation3], 4096
    $region17: #{tpu_custom_call.1} parent=1 // pred_fallthru
      _
    %p37 = scmp.eq.s32.totalorder 0, 0
    // Predicated region
    $region18: #{tpu_custom_call.1} parent=1 // pred_check
      %p38 = pneg %p37
    $region19: #{tpu_custom_call.1} parent=1 // pred_check_branch
      %40 = sbr.rel (%p38) target = $region21
    $region20: #{tpu_custom_call.1} parent=1 // pred_region
      %vm41 = vcmask 7168
      %42 = vst.msk [vmem:[%s7] sm:$0xff] %vm41, 0.0
      %43 = vst.msk [vmem:[%s8] sm:$0xff] %vm41, 0.0
    $region21: #{tpu_custom_call.1} parent=1 // pred_fallthru
      _
    %v44 = vld [vmem:[%s0] sm:$0xf]
    %v45 = vld [vmem:[%s0 + $0x4] sm:$0xf]
    %v46 = vld [vmem:[%s0 + $0x8] sm:$0xf]
    %v47 = vld [vmem:[%s0 + $0xc] sm:$0xf]
    %v48 = vld [vmem:[%s0 + $0x10] sm:$0xf]
    %v49 = vld [vmem:[%s0 + $0x14] sm:$0xf]
    %v50 = vld [vmem:[%s0 + $0x18] sm:$0xf]
    %v51 = vld [vmem:[%s0 + $0x1c] sm:$0xf]
    %v52 = vld [vmem:[%s0 + $0x20] sm:$0xf]
    %v53 = vld [vmem:[%s0 + $0x24] sm:$0xf]
    %v54 = vld [vmem:[%s0 + $0x28] sm:$0xf]
    %v55 = vld [vmem:[%s0 + $0x2c] sm:$0xf]
    %v56 = vld [vmem:[%s0 + $0x30] sm:$0xf]
    %v57 = vld [vmem:[%s0 + $0x34] sm:$0xf]
    %v58 = vld [vmem:[%s0 + $0x38] sm:$0xf]
    %v59 = vld [vmem:[%s0 + $0x3c] sm:$0xf]
    %v60 = vld [vmem:[%s0 + $0x40] sm:$0xf]
    %v61 = vld [vmem:[%s0 + $0x44] sm:$0xf]
    %v62 = vld [vmem:[%s0 + $0x48] sm:$0xf]
    %v63 = vld [vmem:[%s0 + $0x4c] sm:$0xf]
    %v64 = vld [vmem:[%s0 + $0x50] sm:$0xf]
    %v65 = vld [vmem:[%s0 + $0x54] sm:$0xf]
    %v66 = vld [vmem:[%s0 + $0x58] sm:$0xf]
    %v67 = vld [vmem:[%s0 + $0x5c] sm:$0xf]
    %v68 = vld [vmem:[%s0 + $0x60] sm:$0xf]
    %v69 = vld [vmem:[%s0 + $0x64] sm:$0xf]
    %v70 = vld [vmem:[%s0 + $0x68] sm:$0xf]
    %v71 = vld [vmem:[%s0 + $0x6c] sm:$0xf]
    %v72 = vld [vmem:[%s0 + $0x70] sm:$0xf]
    %v73 = vld [vmem:[%s0 + $0x74] sm:$0xf]
    %v74 = vld [vmem:[%s0 + $0x78] sm:$0xf]
    %v75 = vld [vmem:[%s0 + $0x7c] sm:$0xf]
    %v76 = vld [vmem:[%s1] sm:$0xf]
    %v77 = vld [vmem:[%s1 + $0x4] sm:$0xf]
    %v78 = vld [vmem:[%s1 + $0x8] sm:$0xf]
    %v79 = vld [vmem:[%s1 + $0xc] sm:$0xf]
    %v112 = vunpack.c.l.b16 %v44
    %v113 = vunpack.c.l.b16 %v45
    %v114 = vunpack.c.l.b16 %v46
    %v115 = vunpack.c.l.b16 %v47
    %v116 = vunpack.c.l.b16 %v48
    %v117 = vunpack.c.l.b16 %v49
    %v118 = vunpack.c.l.b16 %v50
    %v119 = vunpack.c.l.b16 %v51
    %v120 = vunpack.c.l.b16 %v52
    %v121 = vunpack.c.l.b16 %v53
    %v122 = vunpack.c.l.b16 %v54
    %v123 = vunpack.c.l.b16 %v55
    %v124 = vunpack.c.l.b16 %v56
    %v125 = vunpack.c.l.b16 %v57
    %v126 = vunpack.c.l.b16 %v58
    %v127 = vunpack.c.l.b16 %v59
    %v128 = vunpack.c.l.b16 %v60
    %v129 = vunpack.c.l.b16 %v61
    %v130 = vunpack.c.l.b16 %v62
    %v131 = vunpack.c.l.b16 %v63
    %v132 = vunpack.c.l.b16 %v64
    %v133 = vunpack.c.l.b16 %v65
    %v134 = vunpack.c.l.b16 %v66
    %v135 = vunpack.c.l.b16 %v67
    %v136 = vunpack.c.l.b16 %v68
    %v137 = vunpack.c.l.b16 %v69
    %v138 = vunpack.c.l.b16 %v70
    %v139 = vunpack.c.l.b16 %v71
    %v140 = vunpack.c.l.b16 %v72
    %v141 = vunpack.c.l.b16 %v73
    %v142 = vunpack.c.l.b16 %v74
    %v143 = vunpack.c.l.b16 %v75
    %v144 = vpack.c.b16 %v113, %v112
    %v145 = vpack.c.b16 %v115, %v114
    %v146 = vpack.c.b16 %v117, %v116
    %v147 = vpack.c.b16 %v119, %v118
    %v148 = vpack.c.b16 %v121, %v120
    %v149 = vpack.c.b16 %v123, %v122
    %v150 = vpack.c.b16 %v125, %v124
    %v151 = vpack.c.b16 %v127, %v126
    %v152 = vpack.c.b16 %v129, %v128
    %v153 = vpack.c.b16 %v131, %v130
    %v154 = vpack.c.b16 %v133, %v132
    %v155 = vpack.c.b16 %v135, %v134
    %v156 = vpack.c.b16 %v137, %v136
    %v157 = vpack.c.b16 %v139, %v138
    %v158 = vpack.c.b16 %v141, %v140
    %v159 = vpack.c.b16 %v143, %v142
    %v164 = vunpack.c.l.b16 %v76
    %v165 = vunpack.c.l.b16 %v77
    %v166 = vunpack.c.l.b16 %v78
    %v167 = vunpack.c.l.b16 %v79
    %v168 = vpack.c.b16 %v165, %v164
    %v169 = vpack.c.b16 %v167, %v166
    %vm172 = vcmask 261120
    %v174 = vsel %vm172, %v144, 0
    %v177 = vsel %vm172, %v145, 0
    %v180 = vsel %vm172, %v146, 0
    %v183 = vsel %vm172, %v147, 0
    %v186 = vsel %vm172, %v148, 0
    %v189 = vsel %vm172, %v149, 0
    %v192 = vsel %vm172, %v150, 0
    %v195 = vsel %vm172, %v151, 0
    %v198 = vsel %vm172, %v152, 0
    %v201 = vsel %vm172, %v153, 0
    %v204 = vsel %vm172, %v154, 0
    %v207 = vsel %vm172, %v155, 0
    %v210 = vsel %vm172, %v156, 0
    %v213 = vsel %vm172, %v157, 0
    %v216 = vsel %vm172, %v158, 0
    %v219 = vsel %vm172, %v159, 0
    %221 = vmatprep.subr.bf16.mxu0 0
    %222 = vmatpush1.bf16.msra.mxu0 %v168
    %223 = vmatprep.subr.bf16.mxu0 0
    %224 = vmatpush1.bf16.msra.mxu0 %v169
    %225 = vmatprep.subr.bf16.mxu0 0
    %226 = vmatpush1.bf16.msra.mxu0 0
    %227 = vmatprep.subr.bf16.mxu0 0
    %228 = vmatpush1.bf16.msra.mxu0 0
    %229 = vmatprep.subr.bf16.mxu0 0
    %230 = vmatpush1.bf16.msra.mxu0 0
    %231 = vmatprep.subr.bf16.mxu0 0
    %232 = vmatpush1.bf16.msra.mxu0 0
    %233 = vmatprep.subr.bf16.mxu0 0
    %234 = vmatpush1.bf16.msra.mxu0 0
    %235 = vmatprep.subr.bf16.mxu0 0
    %236 = vmatpush1.bf16.msra.mxu0 0
    %237 = vmatprep.subr.bf16.mxu0 0
    %238 = vmatpush1.bf16.msra.mxu0 0
    %239 = vmatprep.subr.bf16.mxu0 0
    %240 = vmatpush1.bf16.msra.mxu0 0
    %241 = vmatprep.subr.bf16.mxu0 0
    %242 = vmatpush1.bf16.msra.mxu0 0
    %243 = vmatprep.subr.bf16.mxu0 0
    %244 = vmatpush1.bf16.msra.mxu0 0
    %245 = vmatprep.subr.bf16.mxu0 0
    %246 = vmatpush1.bf16.msra.mxu0 0
    %247 = vmatprep.subr.bf16.mxu0 0
    %248 = vmatpush1.bf16.msra.mxu0 0
    %249 = vmatprep.subr.bf16.mxu0 0
    %250 = vmatpush1.bf16.msra.mxu0 0
    %251 = vmatprep.subr.bf16.mxu0 0
    %252 = vmatpush1.bf16.msra.mxu0 0
    %253 = vmatprep.mubr.bf16.mxu0 0
    %254 = vmatmul.mubr.bf16.gmra.mrb[0].mxu0 %v174
    %v255 = vpop.f32.mrb[0].mxu0
    %v256 = vadd.f32 0.0, %v255
    %v257 = vpop.f32.mrb[0].mxu0
    %v258 = vpop.f32.mrb[0].mxu0
    %v259 = vadd.f32 0.0, %v258
    %v260 = vpop.f32.mrb[0].mxu0
    %261 = vmatprep.mubr.bf16.mxu0 0
    %262 = vmatmul.mubr.bf16.gmra.mrb[0].mxu0 %v177
    %v263 = vpop.f32.mrb[0].mxu0
    %v264 = vadd.f32 0.0, %v263
    %v265 = vpop.f32.mrb[0].mxu0
    %v266 = vpop.f32.mrb[0].mxu0
    %v267 = vadd.f32 0.0, %v266
    %v268 = vpop.f32.mrb[0].mxu0
    %269 = vmatprep.mubr.bf16.mxu0 0
    %270 = vmatmul.mubr.bf16.gmra.mrb[0].mxu0 %v180
    %v271 = vpop.f32.mrb[0].mxu0
    %v272 = vadd.f32 0.0, %v271
    %v273 = vpop.f32.mrb[0].mxu0
    %v274 = vpop.f32.mrb[0].mxu0
    %v275 = vadd.f32 0.0, %v274
    %v276 = vpop.f32.mrb[0].mxu0
    %277 = vmatprep.mubr.bf16.mxu0 0
    %278 = vmatmul.mubr.bf16.gmra.mrb[0].mxu0 %v183
    %v279 = vpop.f32.mrb[0].mxu0
    %v280 = vadd.f32 0.0, %v279
    %v281 = vpop.f32.mrb[0].mxu0
    %v282 = vpop.f32.mrb[0].mxu0
    %v283 = vadd.f32 0.0, %v282
    %v284 = vpop.f32.mrb[0].mxu0
    %285 = vmatprep.mubr.bf16.mxu0 0
    %286 = vmatmul.mubr.bf16.gmra.mrb[0].mxu0 %v186
    %v287 = vpop.f32.mrb[0].mxu0
    %v288 = vadd.f32 0.0, %v287
    %v289 = vpop.f32.mrb[0].mxu0
    %v290 = vpop.f32.mrb[0].mxu0
    %v291 = vadd.f32 0.0, %v290
    %v292 = vpop.f32.mrb[0].mxu0
    %293 = vmatprep.mubr.bf16.mxu0 0
    %294 = vmatmul.mubr.bf16.gmra.mrb[0].mxu0 %v189
    %v295 = vpop.f32.mrb[0].mxu0
    %v296 = vadd.f32 0.0, %v295
    %v297 = vpop.f32.mrb[0].mxu0
    %v298 = vpop.f32.mrb[0].mxu0
    %v299 = vadd.f32 0.0, %v298
    %v300 = vpop.f32.mrb[0].mxu0
    %301 = vmatprep.mubr.bf16.mxu0 0
    %302 = vmatmul.mubr.bf16.gmra.mrb[0].mxu0 %v192
    %v303 = vpop.f32.mrb[0].mxu0
    %v304 = vadd.f32 0.0, %v303
    %v305 = vpop.f32.mrb[0].mxu0
    %v306 = vpop.f32.mrb[0].mxu0
    %v307 = vadd.f32 0.0, %v306
    %v308 = vpop.f32.mrb[0].mxu0
    %309 = vmatprep.mubr.bf16.mxu0 0
    %310 = vmatmul.mubr.bf16.gmra.mrb[0].mxu0 %v195
    %v311 = vpop.f32.mrb[0].mxu0
    %v312 = vadd.f32 0.0, %v311
    %v313 = vpop.f32.mrb[0].mxu0
    %v314 = vpop.f32.mrb[0].mxu0
    %v315 = vadd.f32 0.0, %v314
    %v316 = vpop.f32.mrb[0].mxu0
    %317 = vmatprep.mubr.bf16.mxu0 0
    %318 = vmatmul.mubr.bf16.gmra.mrb[0].mxu0 %v198
    %v319 = vpop.f32.mrb[0].mxu0
    %v320 = vadd.f32 0.0, %v319
    %v321 = vpop.f32.mrb[0].mxu0
    %v322 = vpop.f32.mrb[0].mxu0
    %v323 = vadd.f32 0.0, %v322
    %v324 = vpop.f32.mrb[0].mxu0
    %325 = vmatprep.mubr.bf16.mxu0 0
    %326 = vmatmul.mubr.bf16.gmra.mrb[0].mxu0 %v201
    %v327 = vpop.f32.mrb[0].mxu0
    %v328 = vadd.f32 0.0, %v327
    %v329 = vpop.f32.mrb[0].mxu0
    %v330 = vpop.f32.mrb[0].mxu0
    %v331 = vadd.f32 0.0, %v330
    %v332 = vpop.f32.mrb[0].mxu0
    %333 = vmatprep.mubr.bf16.mxu0 0
    %334 = vmatmul.mubr.bf16.gmra.mrb[0].mxu0 %v204
    %v335 = vpop.f32.mrb[0].mxu0
    %v336 = vadd.f32 0.0, %v335
    %v337 = vpop.f32.mrb[0].mxu0
    %v338 = vpop.f32.mrb[0].mxu0
    %v339 = vadd.f32 0.0, %v338
    %v340 = vpop.f32.mrb[0].mxu0
    %341 = vmatprep.mubr.bf16.mxu0 0
    %342 = vmatmul.mubr.bf16.gmra.mrb[0].mxu0 %v207
    %v343 = vpop.f32.mrb[0].mxu0
    %v344 = vadd.f32 0.0, %v343
    %v345 = vpop.f32.mrb[0].mxu0
    %v346 = vpop.f32.mrb[0].mxu0
    %v347 = vadd.f32 0.0, %v346
    %v348 = vpop.f32.mrb[0].mxu0
    %349 = vmatprep.mubr.bf16.mxu0 0
    %350 = vmatmul.mubr.bf16.gmra.mrb[0].mxu0 %v210
    %v351 = vpop.f32.mrb[0].mxu0
    %v352 = vadd.f32 0.0, %v351
    %v353 = vpop.f32.mrb[0].mxu0
    %v354 = vpop.f32.mrb[0].mxu0
    %v355 = vadd.f32 0.0, %v354
    %v356 = vpop.f32.mrb[0].mxu0
    %357 = vmatprep.mubr.bf16.mxu0 0
    %358 = vmatmul.mubr.bf16.gmra.mrb[0].mxu0 %v213
    %v359 = vpop.f32.mrb[0].mxu0
    %v360 = vadd.f32 0.0, %v359
    %v361 = vpop.f32.mrb[0].mxu0
    %v362 = vpop.f32.mrb[0].mxu0
    %v363 = vadd.f32 0.0, %v362
    %v364 = vpop.f32.mrb[0].mxu0
    %365 = vmatprep.mubr.bf16.mxu0 0
    %366 = vmatmul.mubr.bf16.gmra.mrb[0].mxu0 %v216
    %v367 = vpop.f32.mrb[0].mxu0
    %v368 = vadd.f32 0.0, %v367
    %v369 = vpop.f32.mrb[0].mxu0
    %v370 = vpop.f32.mrb[0].mxu0
    %v371 = vadd.f32 0.0, %v370
    %v372 = vpop.f32.mrb[0].mxu0
    %373 = vmatprep.mubr.bf16.mxu0 0
    %374 = vmatmul.mubr.bf16.gmra.mrb[0].mxu0 %v219
    %v375 = vpop.f32.mrb[0].mxu0
    %v376 = vadd.f32 0.0, %v375
    %v377 = vpop.f32.mrb[0].mxu0
    %v378 = vpop.f32.mrb[0].mxu0
    %v379 = vadd.f32 0.0, %v378
    %v380 = vpop.f32.mrb[0].mxu0
    %381 = vdwg.mxu0
    %vm382 = vcmask 64512
    %383 = vst.msk [vmem:[%s3] sm:$0xff] %vm382, %v256
    %384 = vst.msk [vmem:[%s3 + $0x8] sm:$0xff] %vm382, %v259
    %385 = vst.msk [vmem:[%s3 + $0x10] sm:$0xff] %vm382, %v264
    %386 = vst.msk [vmem:[%s3 + $0x18] sm:$0xff] %vm382, %v267
    %387 = vst.msk [vmem:[%s3 + $0x20] sm:$0xff] %vm382, %v272
    %388 = vst.msk [vmem:[%s3 + $0x28] sm:$0xff] %vm382, %v275
    %389 = vst.msk [vmem:[%s3 + $0x30] sm:$0xff] %vm382, %v280
    %390 = vst.msk [vmem:[%s3 + $0x38] sm:$0xff] %vm382, %v283
    %391 = vst.msk [vmem:[%s3 + $0x40] sm:$0xff] %vm382, %v288
    %392 = vst.msk [vmem:[%s3 + $0x48] sm:$0xff] %vm382, %v291
    %393 = vst.msk [vmem:[%s3 + $0x50] sm:$0xff] %vm382, %v296
    %394 = vst.msk [vmem:[%s3 + $0x58] sm:$0xff] %vm382, %v299
    %395 = vst.msk [vmem:[%s3 + $0x60] sm:$0xff] %vm382, %v304
    %396 = vst.msk [vmem:[%s3 + $0x68] sm:$0xff] %vm382, %v307
    %397 = vst.msk [vmem:[%s3 + $0x70] sm:$0xff] %vm382, %v312
    %398 = vst.msk [vmem:[%s3 + $0x78] sm:$0xff] %vm382, %v315
    %399 = vst.msk [vmem:[%s3 + $0x80] sm:$0xff] %vm382, %v320
    %400 = vst.msk [vmem:[%s3 + $0x88] sm:$0xff] %vm382, %v323
    %401 = vst.msk [vmem:[%s3 + $0x90] sm:$0xff] %vm382, %v328
    %402 = vst.msk [vmem:[%s3 + $0x98] sm:$0xff] %vm382, %v331
    %403 = vst.msk [vmem:[%s3 + $0xa0] sm:$0xff] %vm382, %v336
    %404 = vst.msk [vmem:[%s3 + $0xa8] sm:$0xff] %vm382, %v339
    %405 = vst.msk [vmem:[%s3 + $0xb0] sm:$0xff] %vm382, %v344
    %406 = vst.msk [vmem:[%s3 + $0xb8] sm:$0xff] %vm382, %v347
    %407 = vst.msk [vmem:[%s3 + $0xc0] sm:$0xff] %vm382, %v352
    %408 = vst.msk [vmem:[%s3 + $0xc8] sm:$0xff] %vm382, %v355
    %409 = vst.msk [vmem:[%s3 + $0xd0] sm:$0xff] %vm382, %v360
    %410 = vst.msk [vmem:[%s3 + $0xd8] sm:$0xff] %vm382, %v363
    %411 = vst.msk [vmem:[%s3 + $0xe0] sm:$0xff] %vm382, %v368
    %412 = vst.msk [vmem:[%s3 + $0xe8] sm:$0xff] %vm382, %v371
    %413 = vst.msk [vmem:[%s3 + $0xf0] sm:$0xff] %vm382, %v376
    %414 = vst.msk [vmem:[%s3 + $0xf8] sm:$0xff] %vm382, %v379
    %415 = vxpose.xlu0.b32.start [1/16] %v256, 128
    %416 = vxpose.xlu0.b32.cont [2/16] %v259, 128
    %417 = vxpose.xlu0.b32.cont [3/16] %v264, 128
    %418 = vxpose.xlu0.b32.cont [4/16] %v267, 128
    %419 = vxpose.xlu0.b32.cont [5/16] %v272, 128
    %420 = vxpose.xlu0.b32.cont [6/16] %v275, 128
    %421 = vxpose.xlu0.b32.cont [7/16] %v280, 128
    %422 = vxpose.xlu0.b32.cont [8/16] %v283, 128
    %423 = vxpose.xlu0.b32.cont [9/16] %v288, 128
    %424 = vxpose.xlu0.b32.cont [10/16] %v291, 128
    %425 = vxpose.xlu0.b32.cont [11/16] %v296, 128
    %426 = vxpose.xlu0.b32.cont [12/16] %v299, 128
    %427 = vxpose.xlu0.b32.cont [13/16] %v304, 128
    %428 = vxpose.xlu0.b32.cont [14/16] %v307, 128
    %429 = vxpose.xlu0.b32.cont [15/16] %v312, 128
    %430 = vxpose.xlu0.b32.end [16/16] %v315, 128
    %v431 = vpop.trf.xlu0
    %v432 = vpop.trf.xlu0
    %v433 = vpop.trf.xlu0
    %v434 = vpop.trf.xlu0
    %v435 = vpop.trf.xlu0
    %v436 = vpop.trf.xlu0
    %v437 = vpop.trf.xlu0
    %v438 = vpop.trf.xlu0
    %v439 = vpop.trf.xlu0
    %v440 = vpop.trf.xlu0
    %v441 = vpop.trf.xlu0
    %v442 = vpop.trf.xlu0
    %v443 = vpop.trf.xlu0
    %v444 = vpop.trf.xlu0
    %v445 = vpop.trf.xlu0
    %v446 = vpop.trf.xlu0
    %447 = vxpose.xlu0.b32.start [1/16] %v320, 128
    %448 = vxpose.xlu0.b32.cont [2/16] %v323, 128
    %449 = vxpose.xlu0.b32.cont [3/16] %v328, 128
    %450 = vxpose.xlu0.b32.cont [4/16] %v331, 128
    %451 = vxpose.xlu0.b32.cont [5/16] %v336, 128
    %452 = vxpose.xlu0.b32.cont [6/16] %v339, 128
    %453 = vxpose.xlu0.b32.cont [7/16] %v344, 128
    %454 = vxpose.xlu0.b32.cont [8/16] %v347, 128
    %455 = vxpose.xlu0.b32.cont [9/16] %v352, 128
    %456 = vxpose.xlu0.b32.cont [10/16] %v355, 128
    %457 = vxpose.xlu0.b32.cont [11/16] %v360, 128
    %458 = vxpose.xlu0.b32.cont [12/16] %v363, 128
    %459 = vxpose.xlu0.b32.cont [13/16] %v368, 128
    %460 = vxpose.xlu0.b32.cont [14/16] %v371, 128
    %461 = vxpose.xlu0.b32.cont [15/16] %v376, 128
    %462 = vxpose.xlu0.b32.end [16/16] %v379, 128
    %v463 = vpop.trf.xlu0
    %v464 = vpop.trf.xlu0
    %v465 = vpop.trf.xlu0
    %v466 = vpop.trf.xlu0
    %v467 = vpop.trf.xlu0
    %v468 = vpop.trf.xlu0
    %v469 = vpop.trf.xlu0
    %v470 = vpop.trf.xlu0
    %v471 = vpop.trf.xlu0
    %v472 = vpop.trf.xlu0
    %v473 = vpop.trf.xlu0
    %v474 = vpop.trf.xlu0
    %v475 = vpop.trf.xlu0
    %v476 = vpop.trf.xlu0
    %v477 = vpop.trf.xlu0
    %v478 = vpop.trf.xlu0
    %s479 = smul.u32 0, 256
    %v480 = vlaneseq
    %v481 = vand.u32 %v480, 127
    %v482 = vadd.s32 %v481, 128
    %v483 = vstv %s479
    %v484 = vadd.s32 %v483, %v481
    %v485 = vadd.s32 %v483, %v482
    %vm486 = vcmp.lt.s32.totalorder %v484, 16
    %vm487 = vcmp.lt.s32.totalorder %v485, 16
    %v488 = vsel %vm486, 1, 0
    %v489 = vsel %vm487, 1, 0
    %v490 = vcvt.s32.f32 %v488
    %v491 = vcvt.s32.f32 %v489
    %v492 = vrot.slane %v431, 4
    %v493 = vmax.f32 %v431, %v492
    %v494 = vrot.slane %v493, 2
    %v495 = vmax.f32 %v493, %v494
    %v496 = vrot.slane %v495, 1
    %v497 = vmax.f32 %v495, %v496
    %v498 = vrot.slane %v463, 4
    %v499 = vmax.f32 %v463, %v498
    %v500 = vrot.slane %v499, 2
    %v501 = vmax.f32 %v499, %v500
    %v502 = vrot.slane %v501, 1
    %v503 = vmax.f32 %v501, %v502
    %v504 = vsub.f32 %v431, %v497
    %v505 = vsub.f32 %v463, %v503
    %v506 = vmul.f32 %v504, 1.442695
    %v507 = vpow.pop %v506
    %v508 = vmul.f32 %v505, 1.442695
    %v509 = vpow.pop %v508
    %v510 = vrot.slane %v507, 4
    %v511 = vadd.f32 %v507, %v510
    %v512 = vrot.slane %v511, 2
    %v513 = vadd.f32 %v511, %v512
    %v514 = vrot.slane %v513, 1
    %v515 = vadd.f32 %v513, %v514
    %v516 = vrot.slane %v509, 4
    %v517 = vadd.f32 %v509, %v516
    %v518 = vrot.slane %v517, 2
    %v519 = vadd.f32 %v517, %v518
    %v520 = vrot.slane %v519, 1
    %v521 = vadd.f32 %v519, %v520
    %v522 = vrcp.pop %v515
    %v523 = vrcp.pop %v521
    %v524 = vmul.f32 %v507, %v522
    %v525 = vmul.f32 %v509, %v523
    %v526 = vlog2.pop %v515
    %v527 = vmul.f32 %v526, 0.6931472
    %v528 = vlog2.pop %v521
    %v529 = vmul.f32 %v528, 0.6931472
    %v530 = vsub.f32 %v504, %v527
    %v531 = vsub.f32 %v505, %v529
    %v532 = vmul.f32 %v524, %v530
    %v533 = vmul.f32 %v525, %v531
    %v534 = vrot.slane %v532, 4
    %v535 = vadd.f32 %v532, %v534
    %v536 = vrot.slane %v535, 2
    %v537 = vadd.f32 %v535, %v536
    %v538 = vrot.slane %v537, 1
    %v539 = vadd.f32 %v537, %v538
    %v540 = vrot.slane %v533, 4
    %v541 = vadd.f32 %v533, %v540
    %v542 = vrot.slane %v541, 2
    %v543 = vadd.f32 %v541, %v542
    %v544 = vrot.slane %v543, 1
    %v545 = vadd.f32 %v543, %v544
    %v546 = vsub.f32 0.0, %v539
    %v547 = vsub.f32 0.0, %v545
    %v550 = vcombine.low %v546, %v547
    %v552 = vunpack.c.l.s4 1966171168
    %v553 = vunpack.c.0.s8 %v552
    %v554 = vlaneseq
    %v555 = vshrl.u32 %v554, 7
    %v556 = vsub.s32 %v553, %v555
    %v557 = vrot.slane %v550, %v556
    %v559 = vunpack.c.l.s4 1966171168
    %v560 = vunpack.c.0.s8 %v559
    %v561 = vlaneseq
    %v562 = vshrl.u32 %v561, 7
    %v563 = vsub.s32 %v560, %v562
    %v564 = vrot.slane %v557, %v563
    %v566 = vlaneseq
    %vm567 = vcmp.ge.s32.totalorder %v566, 0
    %vm568 = vcmp.lt.s32.totalorder %v566, 256
    %vm569 = vmand %vm567, %vm568
    %570 = vst.msk [vmem:[#allocation5] sm:$0x3] %vm569, %v564
    %v571 = vlaneseq
    %v572 = vshrl.u32 %v571, 7
    %vm573 = vcmp.eq.f32.partialorder %v431, %v497
    %vm574 = vcmp.eq.f32.partialorder %v463, %v503
    %v575 = vsel %vm573, %v572, 8
    %v576 = vsel %vm574, %v572, 8
    %v577 = vrot.slane %v575, 4
    %vm578 = vcmp.lt.s32.totalorder %v575, %v577
    %v579 = vsel %vm578, %v575, %v577
    %v580 = vrot.slane %v579, 2
    %vm581 = vcmp.lt.s32.totalorder %v579, %v580
    %v582 = vsel %vm581, %v579, %v580
    %v583 = vrot.slane %v582, 1
    %vm584 = vcmp.lt.s32.totalorder %v582, %v583
    %v585 = vsel %vm584, %v582, %v583
    %v586 = vrot.slane %v576, 4
    %vm587 = vcmp.lt.s32.totalorder %v576, %v586
    %v588 = vsel %vm587, %v576, %v586
    %v589 = vrot.slane %v588, 2
    %vm590 = vcmp.lt.s32.totalorder %v588, %v589
    %v591 = vsel %vm590, %v588, %v589
    %v592 = vrot.slane %v591, 1
    %vm593 = vcmp.lt.s32.totalorder %v591, %v592
    %v594 = vsel %vm593, %v591, %v592
    %v595 = vcombine.low %v585, %v594
    %v597 = vunpack.c.l.s4 1966171168
    %v598 = vunpack.c.0.s8 %v597
    %v599 = vlaneseq
    %v600 = vshrl.u32 %v599, 7
    %v601 = vsub.s32 %v598, %v600
    %v602 = vrot.slane %v595, %v601
    %v604 = vunpack.c.l.s4 1966171168
    %v605 = vunpack.c.0.s8 %v604
    %v606 = vlaneseq
    %v607 = vshrl.u32 %v606, 7
    %v608 = vsub.s32 %v605, %v607
    %v609 = vrot.slane %v602, %v608
    %610 = vst.msk [vmem:[#allocation6] sm:$0x3] %vm569, %v609
    %vm611 = vcmp.eq.s32.totalorder %v572, %v585
    %vm612 = vcmp.eq.s32.totalorder %v572, %v594
    %v613 = vsel %vm611, 1.0, 0.0
    %v614 = vsel %vm612, 1.0, 0.0
    %v615 = vmul.f32 %v613, %v490
    %v616 = vmul.f32 %v614, %v491
    %v617 = vld [vmem:[%s7] sm:$0xff]
    %619 = vset.pattern.permute.xlu0 0
    %620 = vperm.xlu0 %619, %v617
    %v621 = vpop.permute.xlu0 %620
    %v623 = vmul.f32 %v615, %v621
    %v624 = vmul.f32 %v616, %v621
    %v625 = vrot.slane %v623, 4
    %v626 = vadd.f32 %v623, %v625
    %v627 = vrot.slane %v626, 2
    %v628 = vadd.f32 %v626, %v627
    %v629 = vrot.slane %v628, 1
    %v630 = vadd.f32 %v628, %v629
    %v631 = vrot.slane %v624, 4
    %v632 = vadd.f32 %v624, %v631
    %v633 = vrot.slane %v632, 2
    %v634 = vadd.f32 %v632, %v633
    %v635 = vrot.slane %v634, 1
    %v636 = vadd.f32 %v634, %v635
    %v637 = vpack.c.bf16 %v615, %v615
    %v638 = vpack.c.bf16 %v616, %v616
    %v639 = vld [vmem:[#allocation2] sm:$0xff]
    %v640 = vld [vmem:[#allocation2 + $0x8] sm:$0xff]
    %v641 = vld [vmem:[#allocation2 + $0x10] sm:$0xff]
    %v642 = vld [vmem:[#allocation2 + $0x18] sm:$0xff]
    %v643 = vld [vmem:[#allocation2 + $0x20] sm:$0xff]
    %v644 = vld [vmem:[#allocation2 + $0x28] sm:$0xff]
    %v645 = vld [vmem:[#allocation2 + $0x30] sm:$0xff]
    %v646 = vld [vmem:[#allocation2 + $0x38] sm:$0xff]
    %v647 = vld [vmem:[#allocation2 + $0x40] sm:$0xff]
    %v648 = vld [vmem:[#allocation2 + $0x48] sm:$0xff]
    %v649 = vld [vmem:[#allocation2 + $0x50] sm:$0xff]
    %v650 = vld [vmem:[#allocation2 + $0x58] sm:$0xff]
    %v651 = vld [vmem:[#allocation2 + $0x60] sm:$0xff]
    %v652 = vld [vmem:[#allocation2 + $0x68] sm:$0xff]
    %v653 = vld [vmem:[#allocation2 + $0x70] sm:$0xff]
    %v654 = vld [vmem:[#allocation2 + $0x78] sm:$0xff]
    %v655 = vld [vmem:[#allocation2 + $0x80] sm:$0xff]
    %v656 = vld [vmem:[#allocation2 + $0x88] sm:$0xff]
    %v657 = vld [vmem:[#allocation2 + $0x90] sm:$0xff]
    %v658 = vld [vmem:[#allocation2 + $0x98] sm:$0xff]
    %v659 = vld [vmem:[#allocation2 + $0xa0] sm:$0xff]
    %v660 = vld [vmem:[#allocation2 + $0xa8] sm:$0xff]
    %v661 = vld [vmem:[#allocation2 + $0xb0] sm:$0xff]
    %v662 = vld [vmem:[#allocation2 + $0xb8] sm:$0xff]
    %v663 = vld [vmem:[#allocation2 + $0xc0] sm:$0xff]
    %v664 = vld [vmem:[#allocation2 + $0xc8] sm:$0xff]
    %v665 = vld [vmem:[#allocation2 + $0xd0] sm:$0xff]
    %v666 = vld [vmem:[#allocation2 + $0xd8] sm:$0xff]
    %v667 = vld [vmem:[#allocation2 + $0xe0] sm:$0xff]
    %v668 = vld [vmem:[#allocation2 + $0xe8] sm:$0xff]
    %v669 = vld [vmem:[#allocation2 + $0xf0] sm:$0xff]
    %v670 = vld [vmem:[#allocation2 + $0xf8] sm:$0xff]
    %v703 = vunpack.c.l.b16 %v639
    %v704 = vunpack.c.h.b16 %v639
    %v705 = vunpack.c.l.b16 %v640
    %v706 = vunpack.c.h.b16 %v640
    %v707 = vunpack.c.l.b16 %v641
    %v708 = vunpack.c.h.b16 %v641
    %v709 = vunpack.c.l.b16 %v642
    %v710 = vunpack.c.h.b16 %v642
    %v711 = vunpack.c.l.b16 %v643
    %v712 = vunpack.c.h.b16 %v643
    %v713 = vunpack.c.l.b16 %v644
    %v714 = vunpack.c.h.b16 %v644
    %v715 = vunpack.c.l.b16 %v645
    %v716 = vunpack.c.h.b16 %v645
    %v717 = vunpack.c.l.b16 %v646
    %v718 = vunpack.c.h.b16 %v646
    %v719 = vunpack.c.l.b16 %v647
    %v720 = vunpack.c.h.b16 %v647
    %v721 = vunpack.c.l.b16 %v648
    %v722 = vunpack.c.h.b16 %v648
    %v723 = vunpack.c.l.b16 %v649
    %v724 = vunpack.c.h.b16 %v649
    %v725 = vunpack.c.l.b16 %v650
    %v726 = vunpack.c.h.b16 %v650
    %v727 = vunpack.c.l.b16 %v651
    %v728 = vunpack.c.h.b16 %v651
    %v729 = vunpack.c.l.b16 %v652
    %v730 = vunpack.c.h.b16 %v652
    %v731 = vunpack.c.l.b16 %v653
    %v732 = vunpack.c.h.b16 %v653
    %v733 = vunpack.c.l.b16 %v654
    %v734 = vunpack.c.h.b16 %v654
    %v735 = vunpack.c.l.b16 %v655
    %v736 = vunpack.c.h.b16 %v655
    %v737 = vunpack.c.l.b16 %v656
    %v738 = vunpack.c.h.b16 %v656
    %v739 = vunpack.c.l.b16 %v657
    %v740 = vunpack.c.h.b16 %v657
    %v741 = vunpack.c.l.b16 %v658
    %v742 = vunpack.c.h.b16 %v658
    %v743 = vunpack.c.l.b16 %v659
    %v744 = vunpack.c.h.b16 %v659
    %v745 = vunpack.c.l.b16 %v660
    %v746 = vunpack.c.h.b16 %v660
    %v747 = vunpack.c.l.b16 %v661
    %v748 = vunpack.c.h.b16 %v661
    %v749 = vunpack.c.l.b16 %v662
    %v750 = vunpack.c.h.b16 %v662
    %v751 = vunpack.c.l.b16 %v663
    %v752 = vunpack.c.h.b16 %v663
    %v753 = vunpack.c.l.b16 %v664
    %v754 = vunpack.c.h.b16 %v664
    %v755 = vunpack.c.l.b16 %v665
    %v756 = vunpack.c.h.b16 %v665
    %v757 = vunpack.c.l.b16 %v666
    %v758 = vunpack.c.h.b16 %v666
    %v759 = vunpack.c.l.b16 %v667
    %v760 = vunpack.c.h.b16 %v667
    %v761 = vunpack.c.l.b16 %v668
    %v762 = vunpack.c.h.b16 %v668
    %v763 = vunpack.c.l.b16 %v669
    %v764 = vunpack.c.h.b16 %v669
    %v765 = vunpack.c.l.b16 %v670
    %v766 = vunpack.c.h.b16 %v670
    %v767 = vpack.c.b16 %v705, %v703
    %v768 = vpack.c.b16 %v706, %v704
    %v769 = vpack.c.b16 %v709, %v707
    %v770 = vpack.c.b16 %v710, %v708
    %v771 = vpack.c.b16 %v713, %v711
    %v772 = vpack.c.b16 %v714, %v712
    %v773 = vpack.c.b16 %v717, %v715
    %v774 = vpack.c.b16 %v718, %v716
    %v775 = vpack.c.b16 %v721, %v719
    %v776 = vpack.c.b16 %v722, %v720
    %v777 = vpack.c.b16 %v725, %v723
    %v778 = vpack.c.b16 %v726, %v724
    %v779 = vpack.c.b16 %v729, %v727
    %v780 = vpack.c.b16 %v730, %v728
    %v781 = vpack.c.b16 %v733, %v731
    %v782 = vpack.c.b16 %v734, %v732
    %v783 = vpack.c.b16 %v737, %v735
    %v784 = vpack.c.b16 %v738, %v736
    %v785 = vpack.c.b16 %v741, %v739
    %v786 = vpack.c.b16 %v742, %v740
    %v787 = vpack.c.b16 %v745, %v743
    %v788 = vpack.c.b16 %v746, %v744
    %v789 = vpack.c.b16 %v749, %v747
    %v790 = vpack.c.b16 %v750, %v748
    %v791 = vpack.c.b16 %v753, %v751
    %v792 = vpack.c.b16 %v754, %v752
    %v793 = vpack.c.b16 %v757, %v755
    %v794 = vpack.c.b16 %v758, %v756
    %v795 = vpack.c.b16 %v761, %v759
    %v796 = vpack.c.b16 %v762, %v760
    %v797 = vpack.c.b16 %v765, %v763
    %v798 = vpack.c.b16 %v766, %v764
    %831 = vmatprep.subr.bf16.mxu0 %v768
    %832 = vmatpush1.bf16.msra.mxu0 %v767
    %833 = vmatprep.subr.bf16.mxu0 %v770
    %834 = vmatpush1.bf16.msra.mxu0 %v769
    %835 = vmatprep.subr.bf16.mxu0 %v772
    %836 = vmatpush1.bf16.msra.mxu0 %v771
    %837 = vmatprep.subr.bf16.mxu0 %v774
    %838 = vmatpush1.bf16.msra.mxu0 %v773
    %839 = vmatprep.subr.bf16.mxu0 %v776
    %840 = vmatpush1.bf16.msra.mxu0 %v775
    %841 = vmatprep.subr.bf16.mxu0 %v778
    %842 = vmatpush1.bf16.msra.mxu0 %v777
    %843 = vmatprep.subr.bf16.mxu0 %v780
    %844 = vmatpush1.bf16.msra.mxu0 %v779
    %845 = vmatprep.subr.bf16.mxu0 %v782
    %846 = vmatpush1.bf16.msra.mxu0 %v781
    %847 = vmatprep.subr.bf16.mxu0 %v784
    %848 = vmatpush1.bf16.msra.mxu0 %v783
    %849 = vmatprep.subr.bf16.mxu0 %v786
    %850 = vmatpush1.bf16.msra.mxu0 %v785
    %851 = vmatprep.subr.bf16.mxu0 %v788
    %852 = vmatpush1.bf16.msra.mxu0 %v787
    %853 = vmatprep.subr.bf16.mxu0 %v790
    %854 = vmatpush1.bf16.msra.mxu0 %v789
    %855 = vmatprep.subr.bf16.mxu0 %v792
    %856 = vmatpush1.bf16.msra.mxu0 %v791
    %857 = vmatprep.subr.bf16.mxu0 %v794
    %858 = vmatpush1.bf16.msra.mxu0 %v793
    %859 = vmatprep.subr.bf16.mxu0 %v796
    %860 = vmatpush1.bf16.msra.mxu0 %v795
    %861 = vmatprep.subr.bf16.mxu0 %v798
    %862 = vmatpush1.bf16.msra.mxu0 %v797
    %863 = vmatprep.mubr.bf16.mxu0 %v638
    %864 = vmatmul.mubr.bf16.gmra.mrb[0].mxu0 %v637
    %v865 = vpop.f32.mrb[0].mxu0
    %v866 = vadd.f32 0.0, %v865
    %v867 = vpop.f32.mrb[0].mxu0
    %v868 = vadd.f32 0.0, %v867
    %v869 = vpop.f32.mrb[0].mxu0
    %v870 = vpop.f32.mrb[0].mxu0
    %871 = vdwg.mxu0
    %v872 = vmul.f32 %v615, %v866
    %v873 = vmul.f32 %v616, %v868
    %v874 = vrot.slane %v872, 4
    %v875 = vadd.f32 %v872, %v874
    %v876 = vrot.slane %v875, 2
    %v877 = vadd.f32 %v875, %v876
    %v878 = vrot.slane %v877, 1
    %v879 = vadd.f32 %v877, %v878
    %v880 = vrot.slane %v873, 4
    %v881 = vadd.f32 %v873, %v880
    %v882 = vrot.slane %v881, 2
    %v883 = vadd.f32 %v881, %v882
    %v884 = vrot.slane %v883, 1
    %v885 = vadd.f32 %v883, %v884
    %v886 = vadd.f32 %v630, %v879
    %v887 = vadd.f32 %v636, %v885
    %vm888 = vcmp.lt.f32.partialorder %v886, 4.0
    %vm889 = vcmp.lt.f32.partialorder %v887, 4.0
    %v890 = vsel %vm888, 1, 0
    %v891 = vsel %vm889, 1, 0
    %v892 = vcombine.low %v890, %v891
    %v894 = vunpack.c.l.s4 1966171168
    %v895 = vunpack.c.0.s8 %v894
    %v896 = vlaneseq
    %v897 = vshrl.u32 %v896, 7
    %v898 = vsub.s32 %v895, %v897
    %v899 = vrot.slane %v892, %v898
    %v901 = vunpack.c.l.s4 1966171168
    %v902 = vunpack.c.0.s8 %v901
    %v903 = vlaneseq
    %v904 = vshrl.u32 %v903, 7
    %v905 = vsub.s32 %v902, %v904
    %v906 = vrot.slane %v899, %v905
    %907 = vst.msk [vmem:[#allocation8] sm:$0x3] %vm569, %v906
    %v908 = vadd.f32 %v615, %v616
    %909 = vadd.xlane.f32.xlu0 %v908
    %v910 = vpop.xlane.xlu0 %909
    %v911 = vadd.f32 %v617, %v910
    %vm912 = vcmask 7168
    %913 = vst.msk [vmem:[%s7] sm:$0xff] %vm912, %v911
    %v914 = vld [vmem:[%s8] sm:$0xff]
    %v915 = vmul.f32 %v524, %v490
    %v916 = vmul.f32 %v525, %v491
    %v917 = vadd.f32 %v915, %v916
    %918 = vadd.xlane.f32.xlu0 %v917
    %v919 = vpop.xlane.xlu0 %918
    %v920 = vadd.f32 %v914, %v919
    %921 = vst.msk [vmem:[%s8] sm:$0xff] %vm912, %v920
    // Predicated region
    $region22: #{tpu_custom_call.1} parent=1 // pred_check
      _
    $region23: #{tpu_custom_call.1} parent=1 // pred_check_branch
      %923 = sbr.rel (0) target = $region25
    $region24: #{tpu_custom_call.1} parent=1 // pred_region
      _
    $region25: #{tpu_custom_call.1} parent=1 // pred_fallthru
      _
    // Predicated region
    $region26: #{tpu_custom_call.1} parent=1 // pred_check
      _
    $region27: #{tpu_custom_call.1} parent=1 // pred_check_branch
      %925 = sbr.rel (0) target = $region29
    $region28: #{tpu_custom_call.1} parent=1 // pred_region
      %s927 = ssub.s32 32, 32
      %928 = vsyncadd [#allocation4], %s927
      %s930 = sshll.u32 [#allocation5], 4
      %s931 = int_to_ptr.vmem [resolvable:$true] %s930
      %933 = dma.vmem_to_hbm [thread:$0]  %s931, 32, %s4, [#allocation4]
    $region29: #{tpu_custom_call.1} parent=1 // pred_fallthru
      _
    // Predicated region
    $region30: #{tpu_custom_call.1} parent=1 // pred_check
      _
    $region31: #{tpu_custom_call.1} parent=1 // pred_check_branch
      %935 = sbr.rel (0) target = $region33
    $region32: #{tpu_custom_call.1} parent=1 // pred_region
      %s937 = ssub.s32 32, 32
      %938 = vsyncadd [#allocation7], %s937
      %s940 = sshll.u32 [#allocation6], 4
      %s941 = int_to_ptr.vmem [resolvable:$true] %s940
      %943 = dma.vmem_to_hbm [thread:$0]  %s941, 32, %s5, [#allocation7]
    $region33: #{tpu_custom_call.1} parent=1 // pred_fallthru
      _
    // Predicated region
    $region34: #{tpu_custom_call.1} parent=1 // pred_check
      _
    $region35: #{tpu_custom_call.1} parent=1 // pred_check_branch
      %945 = sbr.rel (0) target = $region37
    $region36: #{tpu_custom_call.1} parent=1 // pred_region
      %s947 = ssub.s32 32, 32
      %948 = vsyncadd [#allocation7], %s947
      %s950 = sshll.u32 [#allocation8], 4
      %s951 = int_to_ptr.vmem [resolvable:$true] %s950
      %953 = dma.vmem_to_hbm [thread:$0]  %s951, 32, %s6, [#allocation7]
    $region37: #{tpu_custom_call.1} parent=1 // pred_fallthru
      _
    // Predicated region
    $region38: #{tpu_custom_call.1} parent=1 // pred_check
      _
    $region39: #{tpu_custom_call.1} parent=1 // pred_check_branch
      %955 = sbr.rel (0) target = $region41
    $region40: #{tpu_custom_call.1} parent=1 // pred_region
      _
    $region41: #{tpu_custom_call.1} parent=1 // pred_fallthru
      _
    // Predicated region
    $region42: #{tpu_custom_call.1} parent=1 // pred_check
      _
    $region43: #{tpu_custom_call.1} parent=1 // pred_check_branch
      %957 = sbr.rel (0) target = $region45
    $region44: #{tpu_custom_call.1} parent=1 // pred_region
      _
    $region45: #{tpu_custom_call.1} parent=1 // pred_fallthru
      _
    // Predicated region
    $region46: #{tpu_custom_call.1} parent=1 // pred_check
      _
    $region47: #{tpu_custom_call.1} parent=1 // pred_check_branch
      %959 = sbr.rel (0) target = $region49
    $region48: #{tpu_custom_call.1} parent=1 // pred_region
      _
    $region49: #{tpu_custom_call.1} parent=1 // pred_fallthru
      _
    // Predicated region
    $region50: #{tpu_custom_call.1} parent=1 // pred_check
      _
    $region51: #{tpu_custom_call.1} parent=1 // pred_check_branch
      %961 = sbr.rel (0) target = $region53
    $region52: #{tpu_custom_call.1} parent=1 // pred_region
      %962 = dma.done [#allocation4], 32
    $region53: #{tpu_custom_call.1} parent=1 // pred_fallthru
      _
    // Predicated region
    $region54: #{tpu_custom_call.1} parent=1 // pred_check
      _
    $region55: #{tpu_custom_call.1} parent=1 // pred_check_branch
      %964 = sbr.rel (0) target = $region57
    $region56: #{tpu_custom_call.1} parent=1 // pred_region
      %965 = dma.done [#allocation7], 32
    $region57: #{tpu_custom_call.1} parent=1 // pred_fallthru
      _
    // Predicated region
    $region58: #{tpu_custom_call.1} parent=1 // pred_check
      _
    $region59: #{tpu_custom_call.1} parent=1 // pred_check_branch
      %967 = sbr.rel (0) target = $region61
    $region60: #{tpu_custom_call.1} parent=1 // pred_region
      %968 = dma.done [#allocation7], 32
    $region61: #{tpu_custom_call.1} parent=1 // pred_fallthru
      _
    // Predicated region
    $region62: #{tpu_custom_call.1} parent=1 // pred_check
      _
    $region63: #{tpu_custom_call.1} parent=1 // pred_check_branch
      %970 = sbr.rel (0) target = $region65
    $region64: #{tpu_custom_call.1} parent=1 // pred_region
      _
    $region65: #{tpu_custom_call.1} parent=1 // pred_fallthru
      _
    // Predicated region
    $region66: #{tpu_custom_call.1} parent=1 // pred_check
      _
    $region67: #{tpu_custom_call.1} parent=1 // pred_check_branch
      %972 = sbr.rel (0) target = $region69
    $region68: #{tpu_custom_call.1} parent=1 // pred_region
      _
    $region69: #{tpu_custom_call.1} parent=1 // pred_fallthru
      _
    %973 = vsyncpa [#allocation3], 1
    %974 = vsyncpa [#allocation4], 1
    %975 = vsyncpa [#allocation7], 1

</llo_original>
